<compile_context>
chip_gen: v6e
topology: v6e:2x2x1
jax: 0.10.0
libtpu: 0.0.40
codegen_flags: <defaults>
</compile_context>

<pallas_src>
import functools

import jax
import jax.numpy as jnp
from jax.experimental import pallas as pl
from jax.experimental.pallas import tpu as pltpu


def _round_up(x, m):
    return (x + m - 1) // m * m


# ---------------------------------------------------------------------------
# Pallas fused GEMM kernel:  out = act( A @ B + bias )
# ---------------------------------------------------------------------------
_A_TILE_BYTES = 6 * 1024 * 1024   # bf16 A-tile budget (Pallas double-buffers it)


def _pick_tm(M, K):
    for tm in (2048, 1024, 512, 256, 128, 64, 32, 16, 8):
        if M % tm == 0 and tm * K * 2 <= _A_TILE_BYTES:
            return tm
    return M


def _pick_tn(cout):
    return cout if cout <= 256 else 256


def _make_gemm_kernel(activation):
    def kernel(a_ref, b_ref, bias_ref, o_ref):
        acc = jnp.dot(a_ref[...], b_ref[...],
                      preferred_element_type=jnp.float32)
        acc = acc + bias_ref[...]
        if activation == "relu":
            acc = jnp.maximum(acc, 0.0)
        elif activation == "softmax":     # softmax over the channel (lane) dim
            m = jnp.max(acc, axis=-1, keepdims=True)
            e = jnp.exp(acc - m)
            acc = e / jnp.sum(e, axis=-1, keepdims=True)
        o_ref[...] = acc.astype(o_ref.dtype)
    return kernel


def fused_gemm(a, b, bias=None, activation="none", out_dtype=jnp.float32):
    """A:(M,K) @ B:(K,Cout) + bias, full K in a single block per grid point."""
    M, K = a.shape
    K2, cout = b.shape
    assert K == K2
    tm = _pick_tm(M, K)
    tn = _pick_tn(cout)
    assert M % tm == 0 and cout % tn == 0
    if activation == "softmax":
        assert tn == cout                 # all channels in one output tile
    if bias is None:
        bias = jnp.zeros((cout,), jnp.float32)
    bias2d = bias.astype(jnp.float32).reshape(1, cout)

    return pl.pallas_call(
        _make_gemm_kernel(activation),
        out_shape=jax.ShapeDtypeStruct((M, cout), out_dtype),
        grid=(M // tm, cout // tn),
        in_specs=[
            pl.BlockSpec((tm, K), lambda i, j: (i, 0)),
            pl.BlockSpec((K, tn), lambda i, j: (0, j)),
            pl.BlockSpec((1, tn), lambda i, j: (0, j)),
        ],
        out_specs=pl.BlockSpec((tm, tn), lambda i, j: (i, j)),
        compiler_params=pltpu.CompilerParams(
            dimension_semantics=("parallel", "parallel"),
            vmem_limit_bytes=48 * 1024 * 1024),
    )(a.astype(jnp.bfloat16), b.astype(jnp.bfloat16), bias2d)


# ---------------------------------------------------------------------------
# Conv / ConvTranspose (NHWC) lowered onto the fused GEMM
# ---------------------------------------------------------------------------
def conv2d_nhwc(x, w, stride=1, padding=0, bias=None, activation="none"):
    """x: (N,H,W,Cin) f32.  w: (Cout,Cin,KH,KW) PyTorch cross-correlation."""
    N, H, W_, Cin = x.shape
    Cout, Cin2, KH, KW = w.shape
    assert Cin == Cin2
    Ho = (H + 2 * padding - KH) // stride + 1
    Wo = (W_ + 2 * padding - KW) // stride + 1
    # Over-sized (multiple-of-8) output grid: M = N*Hop*Wop is tile-aligned, so
    # the GEMM operands never need a jnp.pad copy; extra rows/cols are sliced.
    Hop, Wop = _round_up(Ho, 8), _round_up(Wo, 8)
    pad_b = max(0, (Hop - 1) * stride + KH - H - padding)
    pad_r = max(0, (Wop - 1) * stride + KW - W_ - padding)
    xp = jnp.pad(x.astype(jnp.bfloat16),
                 ((0, 0), (padding, pad_b), (padding, pad_r), (0, 0)))
    taps = []
    for dy in range(KH):
        for dx in range(KW):
            taps.append(xp[:, dy:dy + (Hop - 1) * stride + 1:stride,
                              dx:dx + (Wop - 1) * stride + 1:stride, :])
    a = taps[0] if len(taps) == 1 else jnp.concatenate(taps, axis=-1)
    a = a.reshape(N * Hop * Wop, KH * KW * Cin)
    bm = jnp.transpose(w, (2, 3, 1, 0)).reshape(KH * KW * Cin, Cout)
    out = fused_gemm(a, bm, bias=bias, activation=activation)
    return out.reshape(N, Hop, Wop, Cout)[:, :Ho, :Wo, :]


def conv_transpose2d_nhwc(x, w_ct, bias=None, activation="none"):
    # ConvTranspose2d(stride=1, padding=0) == conv with flipped, channel-swapped
    # weights and full padding K-1.
    Cin, Cout, KH, KW = w_ct.shape
    w_conv = jnp.transpose(w_ct[:, :, ::-1, ::-1], (1, 0, 2, 3))
    return conv2d_nhwc(x, w_conv, stride=1, padding=KH - 1,
                       bias=bias, activation=activation)


# ---------------------------------------------------------------------------
# Glue ops (NHWC): BN (train-mode batch stats) + ReLU, residual, upsample, pool
# ---------------------------------------------------------------------------
@functools.partial(jax.jit, static_argnames=("relu",))
def bn_act(x, gamma, beta, relu=True, eps=1e-5):
    mean = jnp.mean(x, axis=(0, 1, 2), keepdims=True)
    var = jnp.mean(jnp.square(x - mean), axis=(0, 1, 2), keepdims=True)
    y = (x - mean) * jax.lax.rsqrt(var + eps) * gamma + beta
    return jnp.maximum(y, 0.0) if relu else y


@jax.jit
def add_relu(a, b):
    return jnp.maximum(a + b, 0.0)


def upsample2_nhwc(x):   # nn.Upsample(scale_factor=2), mode='nearest'
    return jnp.repeat(jnp.repeat(x, 2, axis=1), 2, axis=2)


def adaptive_avg_pool_nhwc(x, out_hw):
    N, H, W_, C = x.shape
    oh, ow = out_hw
    rows = []
    for i in range(oh):
        hs, he = (i * H) // oh, -(-((i + 1) * H) // oh)
        cols = []
        for j in range(ow):
            ws, we = (j * W_) // ow, -(-((j + 1) * W_) // ow)
            cols.append(jnp.mean(x[:, hs:he, ws:we, :], axis=(1, 2)))
        rows.append(jnp.stack(cols, axis=1))
    return jnp.stack(rows, axis=1)   # (N, oh, ow, C)


# ---------------------------------------------------------------------------
# Res_segNet with BasicBlock (expansion=1), num_block = [1, 1, 1, 1]
# ---------------------------------------------------------------------------
NUM_BLOCK = [1, 1, 1, 1]


def _conv_w(key, cout, cin, kh, kw):
    scale = 1.0 / (cin * kh * kw) ** 0.5
    return jax.random.normal(key, (cout, cin, kh, kw), jnp.float32) * scale


def _ct_w(key, cin, cout, kh, kw):
    scale = 1.0 / (cin * kh * kw) ** 0.5
    return jax.random.normal(key, (cin, cout, kh, kw), jnp.float32) * scale


def _bn(c):
    return (jnp.ones((c,), jnp.float32), jnp.zeros((c,), jnp.float32))


def init_params(key):
    keys = iter(jax.random.split(key, 64))
    nk = lambda: next(keys)
    params = {}

    params['conv1_w'] = _conv_w(nk(), 64, 3, 3, 3)
    params['conv1_bn'] = _bn(64)

    def make_block(cin, cout, stride):
        blk = {'stride': stride,
               'w1': _conv_w(nk(), cout, cin, 3, 3), 'bn1': _bn(cout),
               'w2': _conv_w(nk(), cout, cout, 3, 3), 'bn2': _bn(cout)}
        if stride != 1 or cin != cout:
            blk['ws'] = _conv_w(nk(), cout, cin, 1, 1)
            blk['bns'] = _bn(cout)
        return blk

    in_c = 64
    for name, out_c, stride, nb in [('conv2_x', 64, 1, NUM_BLOCK[0]),
                                    ('conv3_x', 128, 2, NUM_BLOCK[1]),
                                    ('conv4_x', 512, 2, NUM_BLOCK[2]),
                                    ('conv5_x', 1024, 2, NUM_BLOCK[3])]:
        blocks = []
        for s in [stride] + [1] * (nb - 1):
            blocks.append(make_block(in_c, out_c, s))
            in_c = out_c
        params[name] = blocks

    def make_stage(c0, c1, c2, c3):
        return {'ct1_w': _ct_w(nk(), c0, c1, 3, 3),
                'ct1_b': jnp.zeros((c1,), jnp.float32), 'bn1': _bn(c1),
                'ct2_w': _ct_w(nk(), c2, c3, 3, 3),
                'ct2_b': jnp.zeros((c3,), jnp.float32), 'bn2': _bn(c3)}

    params['conv6_x'] = make_stage(1024, 1024, 1024, 512)
    params['conv7_x'] = make_stage(512, 256, 256, 128)
    params['conv8_x'] = make_stage(128, 128, 128, 64)
    params['pixel_class'] = {'ct1_w': _ct_w(nk(), 64, 64, 3, 3), 'bn1': _bn(64),
                             'ct2_w': _ct_w(nk(), 64, 3, 3, 3)}
    # conv_mid and self.softmax exist in __init__ but are unused in forward().
    return params


def basic_block(x, blk):
    r = conv2d_nhwc(x, blk['w1'], stride=blk['stride'], padding=1)
    r = bn_act(r, *blk['bn1'], relu=True)
    r = conv2d_nhwc(r, blk['w2'], stride=1, padding=1)
    r = bn_act(r, *blk['bn2'], relu=False)
    if 'ws' in blk:
        s = conv2d_nhwc(x, blk['ws'], stride=blk['stride'], padding=0)
        s = bn_act(s, *blk['bns'], relu=False)
    else:
        s = x
    return add_relu(r, s)


def decode_stage(x, st):
    # ConvTranspose bias is fused into the GEMM epilogue (it is mathematically
    # absorbed by the following train-mode BatchNorm, but kept for fidelity).
    x = conv_transpose2d_nhwc(x, st['ct1_w'], bias=st['ct1_b'])
    x = bn_act(x, *st['bn1'], relu=True)
    x = upsample2_nhwc(x)
    x = conv_transpose2d_nhwc(x, st['ct2_w'], bias=st['ct2_b'])
    x = bn_act(x, *st['bn2'], relu=True)
    x = upsample2_nhwc(x)
    return x


def forward(params, x_nchw):
    x = jnp.transpose(x_nchw, (0, 2, 3, 1)).astype(jnp.float32)   # NHWC
    out = conv2d_nhwc(x, params['conv1_w'], stride=1, padding=1)
    out = bn_act(out, *params['conv1_bn'], relu=True)
    for name in ('conv2_x', 'conv3_x', 'conv4_x', 'conv5_x'):
        for blk in params[name]:
            out = basic_block(out, blk)
    out = adaptive_avg_pool_nhwc(out, (2, 2))
    out = decode_stage(out, params['conv6_x'])
    out = decode_stage(out, params['conv7_x'])
    out = decode_stage(out, params['conv8_x'])
    pc = params['pixel_class']
    out = conv_transpose2d_nhwc(out, pc['ct1_w'], bias=None)
    out = bn_act(out, *pc['bn1'], relu=True)
    # Final ConvTranspose with the channel Softmax fused into the GEMM epilogue.
    out = conv_transpose2d_nhwc(out, pc['ct2_w'], bias=None, activation="softmax")
    return jnp.transpose(out, (0, 3, 1, 2))   # back to NCHW


if __name__ == "__main__":
    key = jax.random.PRNGKey(0)
    pkey, xkey = jax.random.split(key)
    params = init_params(pkey)
    x = jax.random.normal(xkey, (2, 3, 16, 16), jnp.float32)

    out = forward(params, x)
    out = jax.block_until_ready(out)

    assert out.shape == (2, 3, 384, 384), out.shape
    s = jax.block_until_ready(jnp.sum(out, axis=1))
    assert bool(jnp.all(jnp.abs(s - 1.0) < 1e-4))
    print("KERNEL_OK")
</pallas_src>

<mosaic_0001>
module attributes {stable_mosaic.version = 11 : i64} {
  func.func @kernel(%arg0: i32, %arg1: i32, %arg2: memref<512x27xbf16, #tpu.memory_space<vmem>>, %arg3: memref<27x64xbf16, #tpu.memory_space<vmem>>, %arg4: memref<1x64xf32, #tpu.memory_space<vmem>>, %arg5: memref<512x64xf32, #tpu.memory_space<vmem>>) attributes {dimension_semantics = [#tpu.dimension_semantics<parallel>, #tpu.dimension_semantics<parallel>], iteration_bounds = array<i64: 1, 1>, scalar_prefetch = 0 : i64, scratch_operands = 0 : i64, tpu.core_type = #tpu.core_type<tc>, window_params = [{transform_indices = @transform_0, window_bounds = array<i64: 512, 27>}, {transform_indices = @transform_1, window_bounds = array<i64: 27, 64>}, {transform_indices = @transform_2, window_bounds = array<i64: 1, 64>}, {transform_indices = @transform_3, window_bounds = array<i64: 512, 64>}]} {
    %c0 = arith.constant 0 : index
    %c0_0 = arith.constant 0 : index
    %0 = vector.load %arg2[%c0, %c0_0] : memref<512x27xbf16, #tpu.memory_space<vmem>>, vector<512x27xbf16>
    %c0_1 = arith.constant 0 : index
    %c0_2 = arith.constant 0 : index
    %1 = vector.load %arg3[%c0_1, %c0_2] : memref<27x64xbf16, #tpu.memory_space<vmem>>, vector<27x64xbf16>
    %cst = arith.constant dense<0.000000e+00> : vector<512x64xf32>
    %2 = tpu.matmul %0, %1, %cst {dimension_numbers = #tpu.dot_dimension_numbers<[1], [0], [0], [1], [0, 0, 1, 1], [], []>} : vector<512x27xbf16>, vector<27x64xbf16>, vector<512x64xf32> -> vector<512x64xf32>
    %c0_3 = arith.constant 0 : index
    %c0_4 = arith.constant 0 : index
    %3 = vector.load %arg4[%c0_3, %c0_4] : memref<1x64xf32, #tpu.memory_space<vmem>>, vector<1x64xf32>
    %4 = vector.broadcast %3 : vector<1x64xf32> to vector<512x64xf32>
    %5 = arith.addf %2, %4 : vector<512x64xf32>
    %c0_5 = arith.constant 0 : index
    %c0_6 = arith.constant 0 : index
    %6 = vector.load %arg5[%c0_5, %c0_6] : memref<512x64xf32, #tpu.memory_space<vmem>>, vector<512x64xf32>
    tpu.vector_store %arg5[%c0_5, %c0_6], %5 {strides = array<i32>} : memref<512x64xf32, #tpu.memory_space<vmem>>, vector<512x64xf32>,
    return
  }
  func.func @transform_0(%arg0: i32, %arg1: i32) -> (i32, i32) {
    %c0_i32 = arith.constant 0 : i32
    %c0_i32_0 = arith.constant 0 : i32
    return %arg0, %c0_i32 : i32, i32
  }
  func.func @transform_1(%arg0: i32, %arg1: i32) -> (i32, i32) {
    %c0_i32 = arith.constant 0 : i32
    %c0_i32_0 = arith.constant 0 : i32
    return %c0_i32, %arg1 : i32, i32
  }
  func.func @transform_2(%arg0: i32, %arg1: i32) -> (i32, i32) {
    %c0_i32 = arith.constant 0 : i32
    %c0_i32_0 = arith.constant 0 : i32
    return %c0_i32, %arg1 : i32, i32
  }
  func.func @transform_3(%arg0: i32, %arg1: i32) -> (i32, i32) {
    %c0_i32 = arith.constant 0 : i32
    return %arg0, %arg1 : i32, i32
  }
}

</mosaic_0001>

<llo_original>
// kernel: tpu_custom_call.1
$region0: #{tpu_custom_call.1}
  #allocation0 [shape = 'u32[]', space=smem, size = 0x4, offset = 0x4, fixed_abs, tag = 'smem constant byte address 0x4 - core index']
  #allocation1 [shape = 'u32[144,128]{1,0:T(1,128)}', space=vmem, size = 0x12000, scoped, tag = 'internal scratch']
  %s0 = inlined_call_operand.vmem [shape: bf16[512,27], index: 0, kind: input, shape index: {}]
  %s1 = inlined_call_operand.vmem [shape: bf16[27,64], index: 1, kind: input, shape index: {}]
  %s2 = inlined_call_operand.vmem [shape: f32[1,64], index: 2, kind: input, shape index: {}]
  %s3 = inlined_call_operand.vmem [shape: f32[512,64], index: 3, kind: output, shape index: {}]
  %s4 = sld [smem:[#allocation0]]
  $region22: #{tpu_custom_call.1} parent=0
    _
  %s6 = ssub.s32 1, %s4
  %s7 = scalar_select 0, %s6, %s4
  // Predicated region
  $region2: #{tpu_custom_call.1} parent=0 // pred_check
    _
  $region3: #{tpu_custom_call.1} parent=0 // pred_check_branch
    %9 = sbr.rel (0) target = $region5
  $region4: #{tpu_custom_call.1} parent=0 // pred_region
    _
  $region5: #{tpu_custom_call.1} parent=0 // pred_fallthru
    _
  // Predicated region
  $region6: #{tpu_custom_call.1} parent=0 // pred_check
    _
  $region7: #{tpu_custom_call.1} parent=0 // pred_check_branch
    %11 = sbr.rel (0) target = $region9
  $region8: #{tpu_custom_call.1} parent=0 // pred_region
    _
  $region9: #{tpu_custom_call.1} parent=0 // pred_fallthru
    _
  // Predicated region
  $region10: #{tpu_custom_call.1} parent=0 // pred_check
    _
  $region11: #{tpu_custom_call.1} parent=0 // pred_check_branch
    %13 = sbr.rel (0) target = $region13
  $region12: #{tpu_custom_call.1} parent=0 // pred_region
    _
  $region13: #{tpu_custom_call.1} parent=0 // pred_fallthru
    _
  %v15 = vld [vmem:[%s0] sm:$0xf]
  %v16 = vld [vmem:[%s0 + $0x4] sm:$0xf]
  %v17 = vld [vmem:[%s0 + $0x8] sm:$0xf]
  %v18 = vld [vmem:[%s0 + $0xc] sm:$0xf]
  %v19 = vld [vmem:[%s0 + $0x10] sm:$0xf]
  %v20 = vld [vmem:[%s0 + $0x14] sm:$0xf]
  %v21 = vld [vmem:[%s0 + $0x18] sm:$0xf]
  %v22 = vld [vmem:[%s0 + $0x1c] sm:$0xf]
  %v23 = vld [vmem:[%s0 + $0x20] sm:$0xf]
  %v24 = vld [vmem:[%s0 + $0x24] sm:$0xf]
  %v25 = vld [vmem:[%s0 + $0x28] sm:$0xf]
  %v26 = vld [vmem:[%s0 + $0x2c] sm:$0xf]
  %v27 = vld [vmem:[%s0 + $0x30] sm:$0xf]
  %v28 = vld [vmem:[%s0 + $0x34] sm:$0xf]
  %v29 = vld [vmem:[%s0 + $0x38] sm:$0xf]
  %v30 = vld [vmem:[%s0 + $0x3c] sm:$0xf]
  %v31 = vld [vmem:[%s0 + $0x40] sm:$0xf]
  %v32 = vld [vmem:[%s0 + $0x44] sm:$0xf]
  %v33 = vld [vmem:[%s0 + $0x48] sm:$0xf]
  %v34 = vld [vmem:[%s0 + $0x4c] sm:$0xf]
  %v35 = vld [vmem:[%s0 + $0x50] sm:$0xf]
  %v36 = vld [vmem:[%s0 + $0x54] sm:$0xf]
  %v37 = vld [vmem:[%s0 + $0x58] sm:$0xf]
  %v38 = vld [vmem:[%s0 + $0x5c] sm:$0xf]
  %v39 = vld [vmem:[%s0 + $0x60] sm:$0xf]
  %v40 = vld [vmem:[%s0 + $0x64] sm:$0xf]
  %v41 = vld [vmem:[%s0 + $0x68] sm:$0xf]
  %v42 = vld [vmem:[%s0 + $0x6c] sm:$0xf]
  %v43 = vld [vmem:[%s0 + $0x70] sm:$0xf]
  %v44 = vld [vmem:[%s0 + $0x74] sm:$0xf]
  %v45 = vld [vmem:[%s0 + $0x78] sm:$0xf]
  %v46 = vld [vmem:[%s0 + $0x7c] sm:$0xf]
  %v47 = vld [vmem:[%s0 + $0x80] sm:$0xf]
  %v48 = vld [vmem:[%s0 + $0x84] sm:$0xf]
  %v49 = vld [vmem:[%s0 + $0x88] sm:$0xf]
  %v50 = vld [vmem:[%s0 + $0x8c] sm:$0xf]
  %v51 = vld [vmem:[%s0 + $0x90] sm:$0xf]
  %v52 = vld [vmem:[%s0 + $0x94] sm:$0xf]
  %v53 = vld [vmem:[%s0 + $0x98] sm:$0xf]
  %v54 = vld [vmem:[%s0 + $0x9c] sm:$0xf]
  %v55 = vld [vmem:[%s0 + $0xa0] sm:$0xf]
  %v56 = vld [vmem:[%s0 + $0xa4] sm:$0xf]
  %v57 = vld [vmem:[%s0 + $0xa8] sm:$0xf]
  %v58 = vld [vmem:[%s0 + $0xac] sm:$0xf]
  %v59 = vld [vmem:[%s0 + $0xb0] sm:$0xf]
  %v60 = vld [vmem:[%s0 + $0xb4] sm:$0xf]
  %v61 = vld [vmem:[%s0 + $0xb8] sm:$0xf]
  %v62 = vld [vmem:[%s0 + $0xbc] sm:$0xf]
  %v63 = vld [vmem:[%s0 + $0xc0] sm:$0xf]
  %v64 = vld [vmem:[%s0 + $0xc4] sm:$0xf]
  %v65 = vld [vmem:[%s0 + $0xc8] sm:$0xf]
  %v66 = vld [vmem:[%s0 + $0xcc] sm:$0xf]
  %v67 = vld [vmem:[%s0 + $0xd0] sm:$0xf]
  %v68 = vld [vmem:[%s0 + $0xd4] sm:$0xf]
  %v69 = vld [vmem:[%s0 + $0xd8] sm:$0xf]
  %v70 = vld [vmem:[%s0 + $0xdc] sm:$0xf]
  %v71 = vld [vmem:[%s0 + $0xe0] sm:$0xf]
  %v72 = vld [vmem:[%s0 + $0xe4] sm:$0xf]
  %v73 = vld [vmem:[%s0 + $0xe8] sm:$0xf]
  %v74 = vld [vmem:[%s0 + $0xec] sm:$0xf]
  %v75 = vld [vmem:[%s0 + $0xf0] sm:$0xf]
  %v76 = vld [vmem:[%s0 + $0xf4] sm:$0xf]
  %v77 = vld [vmem:[%s0 + $0xf8] sm:$0xf]
  %v78 = vld [vmem:[%s0 + $0xfc] sm:$0xf]
  %v79 = vld [vmem:[%s1] sm:$0xf]
  %v80 = vld [vmem:[%s1 + $0x4] sm:$0xf]
  %v81 = vld [vmem:[%s1 + $0x8] sm:$0xf]
  %v82 = vld [vmem:[%s1 + $0xc] sm:$0x3]
  %v83 = vld [vmem:[%s2] sm:$0x1]
  %v85 = vlaneseq
  %v86 = vshrl.u32 %v85, 7
  %v87 = vsub.s32 0, %v86
  %v88 = vrot.slane %v83, %v87
  %v154 = vunpack.c.l.b16 %v15
  %v155 = vunpack.c.l.b16 %v16
  %v156 = vunpack.c.l.b16 %v17
  %v157 = vunpack.c.l.b16 %v18
  %v158 = vunpack.c.l.b16 %v19
  %v159 = vunpack.c.l.b16 %v20
  %v160 = vunpack.c.l.b16 %v21
  %v161 = vunpack.c.l.b16 %v22
  %v162 = vunpack.c.l.b16 %v23
  %v163 = vunpack.c.l.b16 %v24
  %v164 = vunpack.c.l.b16 %v25
  %v165 = vunpack.c.l.b16 %v26
  %v166 = vunpack.c.l.b16 %v27
  %v167 = vunpack.c.l.b16 %v28
  %v168 = vunpack.c.l.b16 %v29
  %v169 = vunpack.c.l.b16 %v30
  %v170 = vunpack.c.l.b16 %v31
  %v171 = vunpack.c.l.b16 %v32
  %v172 = vunpack.c.l.b16 %v33
  %v173 = vunpack.c.l.b16 %v34
  %v174 = vunpack.c.l.b16 %v35
  %v175 = vunpack.c.l.b16 %v36
  %v176 = vunpack.c.l.b16 %v37
  %v177 = vunpack.c.l.b16 %v38
  %v178 = vunpack.c.l.b16 %v39
  %v179 = vunpack.c.l.b16 %v40
  %v180 = vunpack.c.l.b16 %v41
  %v181 = vunpack.c.l.b16 %v42
  %v182 = vunpack.c.l.b16 %v43
  %v183 = vunpack.c.l.b16 %v44
  %v184 = vunpack.c.l.b16 %v45
  %v185 = vunpack.c.l.b16 %v46
  %v186 = vunpack.c.l.b16 %v47
  %v187 = vunpack.c.l.b16 %v48
  %v188 = vunpack.c.l.b16 %v49
  %v189 = vunpack.c.l.b16 %v50
  %v190 = vunpack.c.l.b16 %v51
  %v191 = vunpack.c.l.b16 %v52
  %v192 = vunpack.c.l.b16 %v53
  %v193 = vunpack.c.l.b16 %v54
  %v194 = vunpack.c.l.b16 %v55
  %v195 = vunpack.c.l.b16 %v56
  %v196 = vunpack.c.l.b16 %v57
  %v197 = vunpack.c.l.b16 %v58
  %v198 = vunpack.c.l.b16 %v59
  %v199 = vunpack.c.l.b16 %v60
  %v200 = vunpack.c.l.b16 %v61
  %v201 = vunpack.c.l.b16 %v62
  %v202 = vunpack.c.l.b16 %v63
  %v203 = vunpack.c.l.b16 %v64
  %v204 = vunpack.c.l.b16 %v65
  %v205 = vunpack.c.l.b16 %v66
  %v206 = vunpack.c.l.b16 %v67
  %v207 = vunpack.c.l.b16 %v68
  %v208 = vunpack.c.l.b16 %v69
  %v209 = vunpack.c.l.b16 %v70
  %v210 = vunpack.c.l.b16 %v71
  %v211 = vunpack.c.l.b16 %v72
  %v212 = vunpack.c.l.b16 %v73
  %v213 = vunpack.c.l.b16 %v74
  %v214 = vunpack.c.l.b16 %v75
  %v215 = vunpack.c.l.b16 %v76
  %v216 = vunpack.c.l.b16 %v77
  %v217 = vunpack.c.l.b16 %v78
  %v218 = vpack.c.b16 %v155, %v154
  %v219 = vpack.c.b16 %v157, %v156
  %v220 = vpack.c.b16 %v159, %v158
  %v221 = vpack.c.b16 %v161, %v160
  %v222 = vpack.c.b16 %v163, %v162
  %v223 = vpack.c.b16 %v165, %v164
  %v224 = vpack.c.b16 %v167, %v166
  %v225 = vpack.c.b16 %v169, %v168
  %v226 = vpack.c.b16 %v171, %v170
  %v227 = vpack.c.b16 %v173, %v172
  %v228 = vpack.c.b16 %v175, %v174
  %v229 = vpack.c.b16 %v177, %v176
  %v230 = vpack.c.b16 %v179, %v178
  %v231 = vpack.c.b16 %v181, %v180
  %v232 = vpack.c.b16 %v183, %v182
  %v233 = vpack.c.b16 %v185, %v184
  %v234 = vpack.c.b16 %v187, %v186
  %v235 = vpack.c.b16 %v189, %v188
  %v236 = vpack.c.b16 %v191, %v190
  %v237 = vpack.c.b16 %v193, %v192
  %v238 = vpack.c.b16 %v195, %v194
  %v239 = vpack.c.b16 %v197, %v196
  %v240 = vpack.c.b16 %v199, %v198
  %v241 = vpack.c.b16 %v201, %v200
  %v242 = vpack.c.b16 %v203, %v202
  %v243 = vpack.c.b16 %v205, %v204
  %v244 = vpack.c.b16 %v207, %v206
  %v245 = vpack.c.b16 %v209, %v208
  %v246 = vpack.c.b16 %v211, %v210
  %v247 = vpack.c.b16 %v213, %v212
  %v248 = vpack.c.b16 %v215, %v214
  %v249 = vpack.c.b16 %v217, %v216
  %v254 = vunpack.c.l.b16 %v79
  %v255 = vunpack.c.l.b16 %v80
  %v256 = vunpack.c.l.b16 %v81
  %v257 = vunpack.c.l.b16 %v82
  %v258 = vpack.c.b16 %v255, %v254
  %v259 = vpack.c.b16 %v257, %v256
  %vm261 = vcmask 220160
  %v263 = vsel %vm261, %v218, 0
  %v266 = vsel %vm261, %v219, 0
  %v269 = vsel %vm261, %v220, 0
  %v272 = vsel %vm261, %v221, 0
  %v275 = vsel %vm261, %v222, 0
  %v278 = vsel %vm261, %v223, 0
  %v281 = vsel %vm261, %v224, 0
  %v284 = vsel %vm261, %v225, 0
  %v287 = vsel %vm261, %v226, 0
  %v290 = vsel %vm261, %v227, 0
  %v293 = vsel %vm261, %v228, 0
  %v296 = vsel %vm261, %v229, 0
  %v299 = vsel %vm261, %v230, 0
  %v302 = vsel %vm261, %v231, 0
  %v305 = vsel %vm261, %v232, 0
  %v308 = vsel %vm261, %v233, 0
  %v311 = vsel %vm261, %v234, 0
  %v314 = vsel %vm261, %v235, 0
  %v317 = vsel %vm261, %v236, 0
  %v320 = vsel %vm261, %v237, 0
  %v323 = vsel %vm261, %v238, 0
  %v326 = vsel %vm261, %v239, 0
  %v329 = vsel %vm261, %v240, 0
  %v332 = vsel %vm261, %v241, 0
  %v335 = vsel %vm261, %v242, 0
  %v338 = vsel %vm261, %v243, 0
  %v341 = vsel %vm261, %v244, 0
  %v344 = vsel %vm261, %v245, 0
  %v347 = vsel %vm261, %v246, 0
  %v350 = vsel %vm261, %v247, 0
  %v353 = vsel %vm261, %v248, 0
  %v356 = vsel %vm261, %v249, 0
  %vm358 = vcmask 1044480
  %vm359 = vcmask 1045504
  %v360 = vsel %vm358, 4294967295, 65535
  %v361 = vsel %vm359, %v360, 0
  %v363 = vand.u32 %v259, %v361
  %365 = vmatprep.subr.bf16.mxu0 0
  %366 = vmatpush1.bf16.msra.mxu0 0
  %367 = vmatprep.subr.bf16.mxu0 0
  %368 = vmatpush1.bf16.msra.mxu0 0
  %369 = vmatprep.subr.bf16.mxu0 0
  %370 = vmatpush1.bf16.msra.mxu0 0
  %371 = vmatprep.subr.bf16.mxu0 0
  %372 = vmatpush1.bf16.msra.mxu0 0
  %373 = vmatprep.subr.bf16.mxu0 0
  %374 = vmatpush1.bf16.msra.mxu0 0
  %375 = vmatprep.subr.bf16.mxu0 0
  %376 = vmatpush1.bf16.msra.mxu0 0
  %377 = vmatprep.subr.bf16.mxu0 0
  %378 = vmatpush1.bf16.msra.mxu0 %v363
  %379 = vmatprep.subr.bf16.mxu0 0
  %380 = vmatpush1.bf16.msra.mxu0 %v258
  %381 = vmatprep.subr.bf16.mxu0 0
  %382 = vmatpush2.bf16.msra.mxu0 0
  %383 = vmatprep.subr.bf16.mxu0 0
  %384 = vmatpush2.bf16.msra.mxu0 0
  %385 = vmatprep.subr.bf16.mxu0 0
  %386 = vmatpush2.bf16.msra.mxu0 0
  %387 = vmatprep.subr.bf16.mxu0 0
  %388 = vmatpush2.bf16.msra.mxu0 0
  %389 = vmatprep.subr.bf16.mxu0 0
  %390 = vmatpush2.bf16.msra.mxu0 0
  %391 = vmatprep.subr.bf16.mxu0 0
  %392 = vmatpush2.bf16.msra.mxu0 0
  %393 = vmatprep.subr.bf16.mxu0 0
  %394 = vmatpush2.bf16.msra.mxu0 0
  %395 = vmatprep.subr.bf16.mxu0 0
  %396 = vmatpush2.bf16.msra.mxu0 0
  %397 = vmatprep.mubr.bf16.mxu0 0
  %398 = vmatmul.mubr.bf16.gmra.mxu0 %v263
  %v399 = vpop.f32.mrf.mxu0
  %v400 = vadd.f32 %v88, %v399
  %v401 = vpop.f32.mrf.mxu0
  %v402 = vpop.f32.mrf.mxu0
  %v403 = vadd.f32 %v88, %v402
  %v404 = vpop.f32.mrf.mxu0
  %405 = vmatprep.mubr.bf16.mxu0 0
  %406 = vmatmul.mubr.bf16.gmra.mxu0 %v266
  %v407 = vpop.f32.mrf.mxu0
  %v408 = vadd.f32 %v88, %v407
  %v409 = vpop.f32.mrf.mxu0
  %v410 = vpop.f32.mrf.mxu0
  %v411 = vadd.f32 %v88, %v410
  %v412 = vpop.f32.mrf.mxu0
  %413 = vmatprep.mubr.bf16.mxu0 0
  %414 = vmatmul.mubr.bf16.gmra.mxu0 %v269
  %v415 = vpop.f32.mrf.mxu0
  %v416 = vadd.f32 %v88, %v415
  %v417 = vpop.f32.mrf.mxu0
  %v418 = vpop.f32.mrf.mxu0
  %v419 = vadd.f32 %v88, %v418
  %v420 = vpop.f32.mrf.mxu0
  %421 = vmatprep.mubr.bf16.mxu0 0
  %422 = vmatmul.mubr.bf16.gmra.mxu0 %v272
  %v423 = vpop.f32.mrf.mxu0
  %v424 = vadd.f32 %v88, %v423
  %v425 = vpop.f32.mrf.mxu0
  %v426 = vpop.f32.mrf.mxu0
  %v427 = vadd.f32 %v88, %v426
  %v428 = vpop.f32.mrf.mxu0
  %429 = vmatprep.mubr.bf16.mxu0 0
  %430 = vmatmul.mubr.bf16.gmra.mxu0 %v275
  %v431 = vpop.f32.mrf.mxu0
  %v432 = vadd.f32 %v88, %v431
  %v433 = vpop.f32.mrf.mxu0
  %v434 = vpop.f32.mrf.mxu0
  %v435 = vadd.f32 %v88, %v434
  %v436 = vpop.f32.mrf.mxu0
  %437 = vmatprep.mubr.bf16.mxu0 0
  %438 = vmatmul.mubr.bf16.gmra.mxu0 %v278
  %v439 = vpop.f32.mrf.mxu0
  %v440 = vadd.f32 %v88, %v439
  %v441 = vpop.f32.mrf.mxu0
  %v442 = vpop.f32.mrf.mxu0
  %v443 = vadd.f32 %v88, %v442
  %v444 = vpop.f32.mrf.mxu0
  %445 = vmatprep.mubr.bf16.mxu0 0
  %446 = vmatmul.mubr.bf16.gmra.mxu0 %v281
  %v447 = vpop.f32.mrf.mxu0
  %v448 = vadd.f32 %v88, %v447
  %v449 = vpop.f32.mrf.mxu0
  %v450 = vpop.f32.mrf.mxu0
  %v451 = vadd.f32 %v88, %v450
  %v452 = vpop.f32.mrf.mxu0
  %453 = vmatprep.mubr.bf16.mxu0 0
  %454 = vmatmul.mubr.bf16.gmra.mxu0 %v284
  %v455 = vpop.f32.mrf.mxu0
  %v456 = vadd.f32 %v88, %v455
  %v457 = vpop.f32.mrf.mxu0
  %v458 = vpop.f32.mrf.mxu0
  %v459 = vadd.f32 %v88, %v458
  %v460 = vpop.f32.mrf.mxu0
  %461 = vmatprep.mubr.bf16.mxu0 0
  %462 = vmatmul.mubr.bf16.gmra.mxu0 %v287
  %v463 = vpop.f32.mrf.mxu0
  %v464 = vadd.f32 %v88, %v463
  %v465 = vpop.f32.mrf.mxu0
  %v466 = vpop.f32.mrf.mxu0
  %v467 = vadd.f32 %v88, %v466
  %v468 = vpop.f32.mrf.mxu0
  %469 = vmatprep.mubr.bf16.mxu0 0
  %470 = vmatmul.mubr.bf16.gmra.mxu0 %v290
  %v471 = vpop.f32.mrf.mxu0
  %v472 = vadd.f32 %v88, %v471
  %v473 = vpop.f32.mrf.mxu0
  %v474 = vpop.f32.mrf.mxu0
  %v475 = vadd.f32 %v88, %v474
  %v476 = vpop.f32.mrf.mxu0
  %477 = vmatprep.mubr.bf16.mxu0 0
  %478 = vmatmul.mubr.bf16.gmra.mxu0 %v293
  %v479 = vpop.f32.mrf.mxu0
  %v480 = vadd.f32 %v88, %v479
  %v481 = vpop.f32.mrf.mxu0
  %v482 = vpop.f32.mrf.mxu0
  %v483 = vadd.f32 %v88, %v482
  %v484 = vpop.f32.mrf.mxu0
  %485 = vmatprep.mubr.bf16.mxu0 0
  %486 = vmatmul.mubr.bf16.gmra.mxu0 %v296
  %v487 = vpop.f32.mrf.mxu0
  %v488 = vadd.f32 %v88, %v487
  %v489 = vpop.f32.mrf.mxu0
  %v490 = vpop.f32.mrf.mxu0
  %v491 = vadd.f32 %v88, %v490
  %v492 = vpop.f32.mrf.mxu0
  %493 = vmatprep.mubr.bf16.mxu0 0
  %494 = vmatmul.mubr.bf16.gmra.mxu0 %v299
  %v495 = vpop.f32.mrf.mxu0
  %v496 = vadd.f32 %v88, %v495
  %v497 = vpop.f32.mrf.mxu0
  %v498 = vpop.f32.mrf.mxu0
  %v499 = vadd.f32 %v88, %v498
  %v500 = vpop.f32.mrf.mxu0
  %501 = vmatprep.mubr.bf16.mxu0 0
  %502 = vmatmul.mubr.bf16.gmra.mxu0 %v302
  %v503 = vpop.f32.mrf.mxu0
  %v504 = vadd.f32 %v88, %v503
  %v505 = vpop.f32.mrf.mxu0
  %v506 = vpop.f32.mrf.mxu0
  %v507 = vadd.f32 %v88, %v506
  %v508 = vpop.f32.mrf.mxu0
  %509 = vmatprep.mubr.bf16.mxu0 0
  %510 = vmatmul.mubr.bf16.gmra.mxu0 %v305
  %v511 = vpop.f32.mrf.mxu0
  %v512 = vadd.f32 %v88, %v511
  %v513 = vpop.f32.mrf.mxu0
  %v514 = vpop.f32.mrf.mxu0
  %v515 = vadd.f32 %v88, %v514
  %v516 = vpop.f32.mrf.mxu0
  %517 = vmatprep.mubr.bf16.mxu0 0
  %518 = vmatmul.mubr.bf16.gmra.mxu0 %v308
  %v519 = vpop.f32.mrf.mxu0
  %v520 = vadd.f32 %v88, %v519
  %v521 = vpop.f32.mrf.mxu0
  %v522 = vpop.f32.mrf.mxu0
  %v523 = vadd.f32 %v88, %v522
  %v524 = vpop.f32.mrf.mxu0
  %525 = vmatprep.mubr.bf16.mxu0 0
  %526 = vmatmul.mubr.bf16.gmra.mxu0 %v311
  %v527 = vpop.f32.mrf.mxu0
  %v528 = vadd.f32 %v88, %v527
  %v529 = vpop.f32.mrf.mxu0
  %v530 = vpop.f32.mrf.mxu0
  %v531 = vadd.f32 %v88, %v530
  %v532 = vpop.f32.mrf.mxu0
  %533 = vmatprep.mubr.bf16.mxu0 0
  %534 = vmatmul.mubr.bf16.gmra.mxu0 %v314
  %v535 = vpop.f32.mrf.mxu0
  %v536 = vadd.f32 %v88, %v535
  %v537 = vpop.f32.mrf.mxu0
  %v538 = vpop.f32.mrf.mxu0
  %v539 = vadd.f32 %v88, %v538
  %v540 = vpop.f32.mrf.mxu0
  %541 = vmatprep.mubr.bf16.mxu0 0
  %542 = vmatmul.mubr.bf16.gmra.mxu0 %v317
  %v543 = vpop.f32.mrf.mxu0
  %v544 = vadd.f32 %v88, %v543
  %v545 = vpop.f32.mrf.mxu0
  %v546 = vpop.f32.mrf.mxu0
  %v547 = vadd.f32 %v88, %v546
  %v548 = vpop.f32.mrf.mxu0
  %549 = vmatprep.mubr.bf16.mxu0 0
  %550 = vmatmul.mubr.bf16.gmra.mxu0 %v320
  %v551 = vpop.f32.mrf.mxu0
  %v552 = vadd.f32 %v88, %v551
  %v553 = vpop.f32.mrf.mxu0
  %v554 = vpop.f32.mrf.mxu0
  %v555 = vadd.f32 %v88, %v554
  %v556 = vpop.f32.mrf.mxu0
  %557 = vmatprep.mubr.bf16.mxu0 0
  %558 = vmatmul.mubr.bf16.gmra.mxu0 %v323
  %v559 = vpop.f32.mrf.mxu0
  %v560 = vadd.f32 %v88, %v559
  %v561 = vpop.f32.mrf.mxu0
  %v562 = vpop.f32.mrf.mxu0
  %v563 = vadd.f32 %v88, %v562
  %v564 = vpop.f32.mrf.mxu0
  %565 = vmatprep.mubr.bf16.mxu0 0
  %566 = vmatmul.mubr.bf16.gmra.mxu0 %v326
  %v567 = vpop.f32.mrf.mxu0
  %v568 = vadd.f32 %v88, %v567
  %v569 = vpop.f32.mrf.mxu0
  %v570 = vpop.f32.mrf.mxu0
  %v571 = vadd.f32 %v88, %v570
  %v572 = vpop.f32.mrf.mxu0
  %573 = vmatprep.mubr.bf16.mxu0 0
  %574 = vmatmul.mubr.bf16.gmra.mxu0 %v329
  %v575 = vpop.f32.mrf.mxu0
  %v576 = vadd.f32 %v88, %v575
  %v577 = vpop.f32.mrf.mxu0
  %v578 = vpop.f32.mrf.mxu0
  %v579 = vadd.f32 %v88, %v578
  %v580 = vpop.f32.mrf.mxu0
  %581 = vmatprep.mubr.bf16.mxu0 0
  %582 = vmatmul.mubr.bf16.gmra.mxu0 %v332
  %v583 = vpop.f32.mrf.mxu0
  %v584 = vadd.f32 %v88, %v583
  %v585 = vpop.f32.mrf.mxu0
  %v586 = vpop.f32.mrf.mxu0
  %v587 = vadd.f32 %v88, %v586
  %v588 = vpop.f32.mrf.mxu0
  %589 = vmatprep.mubr.bf16.mxu0 0
  %590 = vmatmul.mubr.bf16.gmra.mxu0 %v335
  %v591 = vpop.f32.mrf.mxu0
  %v592 = vadd.f32 %v88, %v591
  %v593 = vpop.f32.mrf.mxu0
  %v594 = vpop.f32.mrf.mxu0
  %v595 = vadd.f32 %v88, %v594
  %v596 = vpop.f32.mrf.mxu0
  %597 = vmatprep.mubr.bf16.mxu0 0
  %598 = vmatmul.mubr.bf16.gmra.mxu0 %v338
  %v599 = vpop.f32.mrf.mxu0
  %v600 = vadd.f32 %v88, %v599
  %v601 = vpop.f32.mrf.mxu0
  %v602 = vpop.f32.mrf.mxu0
  %v603 = vadd.f32 %v88, %v602
  %v604 = vpop.f32.mrf.mxu0
  %605 = vmatprep.mubr.bf16.mxu0 0
  %606 = vmatmul.mubr.bf16.gmra.mxu0 %v341
  %v607 = vpop.f32.mrf.mxu0
  %v608 = vadd.f32 %v88, %v607
  %v609 = vpop.f32.mrf.mxu0
  %v610 = vpop.f32.mrf.mxu0
  %v611 = vadd.f32 %v88, %v610
  %v612 = vpop.f32.mrf.mxu0
  %613 = vmatprep.mubr.bf16.mxu0 0
  %614 = vmatmul.mubr.bf16.gmra.mxu0 %v344
  %v615 = vpop.f32.mrf.mxu0
  %v616 = vadd.f32 %v88, %v615
  %v617 = vpop.f32.mrf.mxu0
  %v618 = vpop.f32.mrf.mxu0
  %v619 = vadd.f32 %v88, %v618
  %v620 = vpop.f32.mrf.mxu0
  %621 = vmatprep.mubr.bf16.mxu0 0
  %622 = vmatmul.mubr.bf16.gmra.mxu0 %v347
  %v623 = vpop.f32.mrf.mxu0
  %v624 = vadd.f32 %v88, %v623
  %v625 = vpop.f32.mrf.mxu0
  %v626 = vpop.f32.mrf.mxu0
  %v627 = vadd.f32 %v88, %v626
  %v628 = vpop.f32.mrf.mxu0
  %629 = vmatprep.mubr.bf16.mxu0 0
  %630 = vmatmul.mubr.bf16.gmra.mxu0 %v350
  %v631 = vpop.f32.mrf.mxu0
  %v632 = vadd.f32 %v88, %v631
  %v633 = vpop.f32.mrf.mxu0
  %v634 = vpop.f32.mrf.mxu0
  %v635 = vadd.f32 %v88, %v634
  %v636 = vpop.f32.mrf.mxu0
  %637 = vmatprep.mubr.bf16.mxu0 0
  %638 = vmatmul.mubr.bf16.gmra.mxu0 %v353
  %v639 = vpop.f32.mrf.mxu0
  %v640 = vadd.f32 %v88, %v639
  %v641 = vpop.f32.mrf.mxu0
  %v642 = vpop.f32.mrf.mxu0
  %v643 = vadd.f32 %v88, %v642
  %v644 = vpop.f32.mrf.mxu0
  %645 = vmatprep.mubr.bf16.mxu0 0
  %646 = vmatmul.mubr.bf16.gmra.mxu0 %v356
  %v647 = vpop.f32.mrf.mxu0
  %v648 = vadd.f32 %v88, %v647
  %v649 = vpop.f32.mrf.mxu0
  %v650 = vpop.f32.mrf.mxu0
  %v651 = vadd.f32 %v88, %v650
  %v652 = vpop.f32.mrf.mxu0
  %653 = vdwg.mxu0
  %vm654 = vcmask 523264
  %655 = vst.msk [vmem:[%s3] sm:$0xff] %vm654, %v400
  %656 = vst.msk [vmem:[%s3 + $0x8] sm:$0xff] %vm654, %v403
  %657 = vst.msk [vmem:[%s3 + $0x10] sm:$0xff] %vm654, %v408
  %658 = vst.msk [vmem:[%s3 + $0x18] sm:$0xff] %vm654, %v411
  %659 = vst.msk [vmem:[%s3 + $0x20] sm:$0xff] %vm654, %v416
  %660 = vst.msk [vmem:[%s3 + $0x28] sm:$0xff] %vm654, %v419
  %661 = vst.msk [vmem:[%s3 + $0x30] sm:$0xff] %vm654, %v424
  %662 = vst.msk [vmem:[%s3 + $0x38] sm:$0xff] %vm654, %v427
  %663 = vst.msk [vmem:[%s3 + $0x40] sm:$0xff] %vm654, %v432
  %664 = vst.msk [vmem:[%s3 + $0x48] sm:$0xff] %vm654, %v435
  %665 = vst.msk [vmem:[%s3 + $0x50] sm:$0xff] %vm654, %v440
  %666 = vst.msk [vmem:[%s3 + $0x58] sm:$0xff] %vm654, %v443
  %667 = vst.msk [vmem:[%s3 + $0x60] sm:$0xff] %vm654, %v448
  %668 = vst.msk [vmem:[%s3 + $0x68] sm:$0xff] %vm654, %v451
  %669 = vst.msk [vmem:[%s3 + $0x70] sm:$0xff] %vm654, %v456
  %670 = vst.msk [vmem:[%s3 + $0x78] sm:$0xff] %vm654, %v459
  %671 = vst.msk [vmem:[%s3 + $0x80] sm:$0xff] %vm654, %v464
  %672 = vst.msk [vmem:[%s3 + $0x88] sm:$0xff] %vm654, %v467
  %673 = vst.msk [vmem:[%s3 + $0x90] sm:$0xff] %vm654, %v472
  %674 = vst.msk [vmem:[%s3 + $0x98] sm:$0xff] %vm654, %v475
  %675 = vst.msk [vmem:[%s3 + $0xa0] sm:$0xff] %vm654, %v480
  %676 = vst.msk [vmem:[%s3 + $0xa8] sm:$0xff] %vm654, %v483
  %677 = vst.msk [vmem:[%s3 + $0xb0] sm:$0xff] %vm654, %v488
  %678 = vst.msk [vmem:[%s3 + $0xb8] sm:$0xff] %vm654, %v491
  %679 = vst.msk [vmem:[%s3 + $0xc0] sm:$0xff] %vm654, %v496
  %680 = vst.msk [vmem:[%s3 + $0xc8] sm:$0xff] %vm654, %v499
  %681 = vst.msk [vmem:[%s3 + $0xd0] sm:$0xff] %vm654, %v504
  %682 = vst.msk [vmem:[%s3 + $0xd8] sm:$0xff] %vm654, %v507
  %683 = vst.msk [vmem:[%s3 + $0xe0] sm:$0xff] %vm654, %v512
  %684 = vst.msk [vmem:[%s3 + $0xe8] sm:$0xff] %vm654, %v515
  %685 = vst.msk [vmem:[%s3 + $0xf0] sm:$0xff] %vm654, %v520
  %686 = vst.msk [vmem:[%s3 + $0xf8] sm:$0xff] %vm654, %v523
  %687 = vst.msk [vmem:[%s3 + $0x100] sm:$0xff] %vm654, %v528
  %688 = vst.msk [vmem:[%s3 + $0x108] sm:$0xff] %vm654, %v531
  %689 = vst.msk [vmem:[%s3 + $0x110] sm:$0xff] %vm654, %v536
  %690 = vst.msk [vmem:[%s3 + $0x118] sm:$0xff] %vm654, %v539
  %691 = vst.msk [vmem:[%s3 + $0x120] sm:$0xff] %vm654, %v544
  %692 = vst.msk [vmem:[%s3 + $0x128] sm:$0xff] %vm654, %v547
  %693 = vst.msk [vmem:[%s3 + $0x130] sm:$0xff] %vm654, %v552
  %694 = vst.msk [vmem:[%s3 + $0x138] sm:$0xff] %vm654, %v555
  %695 = vst.msk [vmem:[%s3 + $0x140] sm:$0xff] %vm654, %v560
  %696 = vst.msk [vmem:[%s3 + $0x148] sm:$0xff] %vm654, %v563
  %697 = vst.msk [vmem:[%s3 + $0x150] sm:$0xff] %vm654, %v568
  %698 = vst.msk [vmem:[%s3 + $0x158] sm:$0xff] %vm654, %v571
  %699 = vst.msk [vmem:[%s3 + $0x160] sm:$0xff] %vm654, %v576
  %700 = vst.msk [vmem:[%s3 + $0x168] sm:$0xff] %vm654, %v579
  %701 = vst.msk [vmem:[%s3 + $0x170] sm:$0xff] %vm654, %v584
  %702 = vst.msk [vmem:[%s3 + $0x178] sm:$0xff] %vm654, %v587
  %703 = vst.msk [vmem:[%s3 + $0x180] sm:$0xff] %vm654, %v592
  %704 = vst.msk [vmem:[%s3 + $0x188] sm:$0xff] %vm654, %v595
  %705 = vst.msk [vmem:[%s3 + $0x190] sm:$0xff] %vm654, %v600
  %706 = vst.msk [vmem:[%s3 + $0x198] sm:$0xff] %vm654, %v603
  %707 = vst.msk [vmem:[%s3 + $0x1a0] sm:$0xff] %vm654, %v608
  %708 = vst.msk [vmem:[%s3 + $0x1a8] sm:$0xff] %vm654, %v611
  %709 = vst.msk [vmem:[%s3 + $0x1b0] sm:$0xff] %vm654, %v616
  %710 = vst.msk [vmem:[%s3 + $0x1b8] sm:$0xff] %vm654, %v619
  %711 = vst.msk [vmem:[%s3 + $0x1c0] sm:$0xff] %vm654, %v624
  %712 = vst.msk [vmem:[%s3 + $0x1c8] sm:$0xff] %vm654, %v627
  %713 = vst.msk [vmem:[%s3 + $0x1d0] sm:$0xff] %vm654, %v632
  %714 = vst.msk [vmem:[%s3 + $0x1d8] sm:$0xff] %vm654, %v635
  %715 = vst.msk [vmem:[%s3 + $0x1e0] sm:$0xff] %vm654, %v640
  %716 = vst.msk [vmem:[%s3 + $0x1e8] sm:$0xff] %vm654, %v643
  %717 = vst.msk [vmem:[%s3 + $0x1f0] sm:$0xff] %vm654, %v648
  %718 = vst.msk [vmem:[%s3 + $0x1f8] sm:$0xff] %vm654, %v651
  // Predicated region
  $region14: #{tpu_custom_call.1} parent=0 // pred_check
    _
  $region15: #{tpu_custom_call.1} parent=0 // pred_check_branch
    %720 = sbr.rel (0) target = $region17
  $region16: #{tpu_custom_call.1} parent=0 // pred_region
    _
  $region17: #{tpu_custom_call.1} parent=0 // pred_fallthru
    _
  // Predicated region
  $region18: #{tpu_custom_call.1} parent=0 // pred_check
    _
  $region19: #{tpu_custom_call.1} parent=0 // pred_check_branch
    %722 = sbr.rel (0) target = $region21
  $region20: #{tpu_custom_call.1} parent=0 // pred_region
    _
  $region21: #{tpu_custom_call.1} parent=0 // pred_fallthru
    _

</llo_original>
